<compile_context>
chip_gen: v6e
topology: v6e:2x2x1
jax: 0.10.0
libtpu: 0.0.40
codegen_flags: <defaults>
</compile_context>

<pallas_src>
import functools

import jax
import jax.numpy as jnp
from jax.experimental import pallas as pl
from jax.experimental.pallas import tpu as pltpu

EPS = 1e-5
LANE = 128
VMEM_BUDGET = 24 * 1024 * 1024    # per-step working-set budget (safe on v5e/v6e/v7x)
VMEM_LIMIT = 48 * 1024 * 1024     # scoped VMEM limit passed to Mosaic


# ----------------------------- Pallas kernels ------------------------------

def _conv_bn_stats_kernel(p_ref, w_ref, gamma_ref, beta_ref,
                          y_ref, scale_ref, shift_ref,
                          sum_ref, sq_ref, *, m_total, eps):
    """Tiled conv-as-matmul + cross-tile BN statistics.

    Writes the raw conv output tile and accumulates per-channel sum / sum-sq
    across grid steps; at the last step emits folded BN scale/shift.
    Zero-padded M rows / K columns contribute exactly zero to the stats.
    """
    i = pl.program_id(0)

    @pl.when(i == 0)
    def _():
        sum_ref[...] = jnp.zeros_like(sum_ref)
        sq_ref[...] = jnp.zeros_like(sq_ref)

    y = jnp.dot(p_ref[...], w_ref[...], preferred_element_type=jnp.float32)
    y_ref[...] = y
    sum_ref[...] += jnp.sum(y, axis=0, keepdims=True)
    sq_ref[...] += jnp.sum(y * y, axis=0, keepdims=True)

    @pl.when(i == pl.num_programs(0) - 1)
    def _():
        inv_m = jnp.float32(1.0 / m_total)
        mean = sum_ref[...] * inv_m
        var = jnp.maximum(sq_ref[...] * inv_m - mean * mean, 0.0)
        scale = gamma_ref[...] * jax.lax.rsqrt(var + eps)
        scale_ref[...] = scale
        shift_ref[...] = beta_ref[...] - mean * scale


def _bn_apply_kernel(y_ref, scale_ref, shift_ref, mask_ref, o_ref):
    """y*scale + shift, ReLU only on columns where mask==1 (conv1 branch)."""
    z = y_ref[...] * scale_ref[...] + shift_ref[...]
    # mask=1 -> max(z, 0); mask=0 -> max(z, z) == z   (pure VPU, no select)
    o_ref[...] = jnp.maximum(z, z * (1.0 - mask_ref[...]))


def _bn_add_relu_kernel(y_ref, scale_ref, shift_ref, res_ref, o_ref):
    """y*scale + shift, + residual, ReLU (final block output)."""
    z = y_ref[...] * scale_ref[...] + shift_ref[...]
    o_ref[...] = jnp.maximum(z + res_ref[...], 0.0)


# --------------------------- pallas_call wrappers ---------------------------

def _round_up(x, m):
    return (x + m - 1) // m * m


def _pad_to(a, rows, cols):
    r, c = a.shape
    if r == rows and c == cols:
        return a
    return jnp.pad(a, ((0, rows - r), (0, cols - c)))


def _pick_tm(m, kpad, cpad, in_bytes, budget=VMEM_BUDGET):
    """Largest M tile (multiple of 8, <=1024) whose double-buffered working set
    fits the VMEM budget (also safe on v7x's 64 MiB)."""
    tm = min(1024, _round_up(m, 8))

    def footprint(t):
        return (2 * t * (kpad * in_bytes + cpad * 4)       # dbl-buffered tiles
                + kpad * cpad * in_bytes                    # resident weights
                + 16 * cpad * 4)                            # gamma/beta/stats

    while tm > 8 and footprint(tm) > budget:
        tm = max(8, _round_up(tm // 2, 8))
    return tm


def conv_bn_stats_pallas(patches, w, gamma, beta, *, m_true, tm, compute_dtype):
    mpad, kpad = patches.shape
    cpad = w.shape[1]
    kern = functools.partial(_conv_bn_stats_kernel,
                             m_total=float(m_true), eps=EPS)
    return pl.pallas_call(
        kern,
        grid=(mpad // tm,),
        in_specs=[
            pl.BlockSpec((tm, kpad), lambda i: (i, 0)),    # patch tile (pipelined)
            pl.BlockSpec((kpad, cpad), lambda i: (0, 0)),  # weights resident
            pl.BlockSpec((1, cpad), lambda i: (0, 0)),     # gamma
            pl.BlockSpec((1, cpad), lambda i: (0, 0)),     # beta
        ],
        out_specs=[
            pl.BlockSpec((tm, cpad), lambda i: (i, 0)),    # raw conv output
            pl.BlockSpec((1, cpad), lambda i: (0, 0)),     # BN scale (last step)
            pl.BlockSpec((1, cpad), lambda i: (0, 0)),     # BN shift (last step)
        ],
        out_shape=[
            jax.ShapeDtypeStruct((mpad, cpad), jnp.float32),
            jax.ShapeDtypeStruct((1, cpad), jnp.float32),
            jax.ShapeDtypeStruct((1, cpad), jnp.float32),
        ],
        scratch_shapes=[pltpu.VMEM((1, cpad), jnp.float32),
                        pltpu.VMEM((1, cpad), jnp.float32)],
        compiler_params=pltpu.CompilerParams(
            dimension_semantics=("arbitrary",),   # stats carried across M tiles
            vmem_limit_bytes=VMEM_LIMIT),
    )(patches.astype(compute_dtype), w.astype(compute_dtype),
      gamma.astype(jnp.float32), beta.astype(jnp.float32))


def bn_apply_pallas(y, scale, shift, mask, *, tm):
    mpad, cpad = y.shape
    return pl.pallas_call(
        _bn_apply_kernel,
        grid=(mpad // tm,),
        in_specs=[
            pl.BlockSpec((tm, cpad), lambda i: (i, 0)),
            pl.BlockSpec((1, cpad), lambda i: (0, 0)),
            pl.BlockSpec((1, cpad), lambda i: (0, 0)),
            pl.BlockSpec((1, cpad), lambda i: (0, 0)),
        ],
        out_specs=pl.BlockSpec((tm, cpad), lambda i: (i, 0)),
        out_shape=jax.ShapeDtypeStruct((mpad, cpad), jnp.float32),
        compiler_params=pltpu.CompilerParams(
            dimension_semantics=("parallel",),
            vmem_limit_bytes=VMEM_LIMIT),
    )(y, scale, shift, mask)


def bn_add_relu_pallas(y, scale, shift, res, *, tm):
    mpad, cpad = y.shape
    return pl.pallas_call(
        _bn_add_relu_kernel,
        grid=(mpad // tm,),
        in_specs=[
            pl.BlockSpec((tm, cpad), lambda i: (i, 0)),
            pl.BlockSpec((1, cpad), lambda i: (0, 0)),
            pl.BlockSpec((1, cpad), lambda i: (0, 0)),
            pl.BlockSpec((tm, cpad), lambda i: (i, 0)),
        ],
        out_specs=pl.BlockSpec((tm, cpad), lambda i: (i, 0)),
        out_shape=jax.ShapeDtypeStruct((mpad, cpad), jnp.float32),
        compiler_params=pltpu.CompilerParams(
            dimension_semantics=("parallel",),
            vmem_limit_bytes=VMEM_LIMIT),
    )(y, scale, shift, res)


# ------------------------------ JAX glue -----------------------------------

def _im2col(x_nhwc, ksize, stride, pad):
    """x_nhwc: (N,H,W,C) -> (N*Ho*Wo, ksize*ksize*C), kh-major then kw then C."""
    n, h, w, c = x_nhwc.shape
    xp = jnp.pad(x_nhwc, ((0, 0), (pad, pad), (pad, pad), (0, 0)))
    ho = (h + 2 * pad - ksize) // stride + 1
    wo = (w + 2 * pad - ksize) // stride + 1
    cols = []
    for kh in range(ksize):
        for kw in range(ksize):
            patch = xp[:, kh:kh + stride * ho:stride,
                       kw:kw + stride * wo:stride, :]
            cols.append(patch)
    patches = jnp.concatenate(cols, axis=-1)          # (N, Ho, Wo, k*k*C)
    return patches.reshape(n * ho * wo, ksize * ksize * c), ho, wo


def _w_to_mat(w_oihw):
    """(Cout, Cin, kh, kw) -> (kh*kw*Cin, Cout), matching _im2col ordering."""
    cout = w_oihw.shape[0]
    return jnp.transpose(w_oihw, (2, 3, 1, 0)).reshape(-1, cout)


def restnet_down_block(x_nchw, params, stride, compute_dtype=jnp.bfloat16):
    s0, s1 = stride
    n, cin, h, w = x_nchw.shape
    cout = params['w1'].shape[0]
    f32 = jnp.float32
    in_bytes = jnp.dtype(compute_dtype).itemsize

    x = jnp.transpose(x_nchw, (0, 2, 3, 1)).astype(f32)          # NHWC

    # ---- stage 1: conv1(3x3,s0,p1)+BN1+ReLU fused with shortcut 1x1+BNe ----
    # The 1x1/stride-s0 patches are exactly the center-tap Cin columns of the
    # 3x3/pad-1 im2col matrix, so the shortcut weights (zero everywhere except
    # the center rows) are concatenated onto W1 along Cout: one matmul, one
    # DMA stream, both branches.
    p1, ho1, wo1 = _im2col(x, 3, s0, 1)                          # (M1, 9*cin)
    m1 = n * ho1 * wo1
    k1 = 9 * cin
    w1 = _w_to_mat(params['w1'])                                 # (9*cin, cout)
    we = _w_to_mat(params['we'])                                 # (cin, cout)
    we_exp = jnp.zeros((k1, cout), f32).at[4 * cin:5 * cin, :].set(we)
    w_comb = jnp.concatenate([w1, we_exp], axis=1)               # (k1, 2*cout)
    g_comb = jnp.concatenate([params['g1'], params['ge']]).reshape(1, -1)
    b_comb = jnp.concatenate([params['bt1'], params['bte']]).reshape(1, -1)
    # conv biases b1/be are dropped: training-mode BN cancels them exactly.

    kpad1 = _round_up(k1, LANE)
    cpad1 = _round_up(2 * cout, LANE)
    tm1 = _pick_tm(m1, kpad1, cpad1, in_bytes)
    mpad1 = _round_up(m1, tm1)

    y1, sc1, sh1 = conv_bn_stats_pallas(
        _pad_to(p1, mpad1, kpad1), _pad_to(w_comb, kpad1, cpad1),
        _pad_to(g_comb, 1, cpad1), _pad_to(b_comb, 1, cpad1),
        m_true=m1, tm=tm1, compute_dtype=compute_dtype)

    relu_mask = (jnp.arange(cpad1) < cout).astype(f32).reshape(1, cpad1)
    z1 = bn_apply_pallas(y1, sc1, sh1, relu_mask, tm=tm1)        # (mpad1, cpad1)

    o1 = z1[:m1, :cout].reshape(n, ho1, wo1, cout)               # ReLU(BN1(conv1))
    extra = z1[:m1, cout:2 * cout]                               # BNe(conv_e), no ReLU

    # ---- stage 2: conv2(3x3,s1,p1) + BN2 + shortcut add + ReLU ----
    p2, ho2, wo2 = _im2col(o1, 3, s1, 1)
    m2 = n * ho2 * wo2
    k2 = 9 * cout
    w2 = _w_to_mat(params['w2'])
    kpad2 = _round_up(k2, LANE)
    cpad2 = _round_up(cout, LANE)
    tm2 = _pick_tm(m2, kpad2, cpad2, in_bytes)
    mpad2 = _round_up(m2, tm2)

    y2, sc2, sh2 = conv_bn_stats_pallas(
        _pad_to(p2, mpad2, kpad2), _pad_to(w2, kpad2, cpad2),
        _pad_to(params['g2'].reshape(1, -1), 1, cpad2),
        _pad_to(params['bt2'].reshape(1, -1), 1, cpad2),
        m_true=m2, tm=tm2, compute_dtype=compute_dtype)

    # Residual: shortcut rows align 1:1 with conv2 output rows (requires
    # stride[1] == 1, the same constraint the PyTorch residual add imposes).
    res = _pad_to(extra, mpad2, cpad2)
    out = bn_add_relu_pallas(y2, sc2, sh2, res, tm=tm2)          # (mpad2, cpad2)

    out = out[:m2, :cout].reshape(n, ho2, wo2, cout)
    return jnp.transpose(out, (0, 3, 1, 2))                      # back to NCHW


# --------------------------- pure-JAX reference -----------------------------

def _ref_forward(x, p, stride):
    s0, s1 = stride

    def conv(x, w, b, s, pad):
        y = jax.lax.conv_general_dilated(
            x, w, (s, s), [(pad, pad), (pad, pad)],
            dimension_numbers=('NCHW', 'OIHW', 'NCHW'))
        return y + b.reshape(1, -1, 1, 1)

    def bn(y, g, bt):
        mean = jnp.mean(y, axis=(0, 2, 3), keepdims=True)
        var = jnp.mean(jnp.square(y - mean), axis=(0, 2, 3), keepdims=True)
        return ((y - mean) * jax.lax.rsqrt(var + EPS)
                * g.reshape(1, -1, 1, 1) + bt.reshape(1, -1, 1, 1))

    extra = bn(conv(x, p['we'], p['be'], s0, 0), p['ge'], p['bte'])
    o = jnp.maximum(bn(conv(x, p['w1'], p['b1'], s0, 1), p['g1'], p['bt1']), 0)
    o = bn(conv(o, p['w2'], p['b2'], s1, 1), p['g2'], p['bt2'])
    return jnp.maximum(extra + o, 0)


# --------------------------------- main -------------------------------------

if __name__ == "__main__":
    N, CIN, COUT, H, W = 2, 4, 8, 16, 16
    STRIDE = (2, 1)

    key = jax.random.PRNGKey(0)
    ks = jax.random.split(key, 13)
    params = {
        'w1': 0.1 * jax.random.normal(ks[0], (COUT, CIN, 3, 3), jnp.float32),
        'b1': 0.1 * jax.random.normal(ks[1], (COUT,), jnp.float32),
        'g1': 1.0 + 0.1 * jax.random.normal(ks[2], (COUT,), jnp.float32),
        'bt1': 0.1 * jax.random.normal(ks[3], (COUT,), jnp.float32),
        'w2': 0.1 * jax.random.normal(ks[4], (COUT, COUT, 3, 3), jnp.float32),
        'b2': 0.1 * jax.random.normal(ks[5], (COUT,), jnp.float32),
        'g2': 1.0 + 0.1 * jax.random.normal(ks[6], (COUT,), jnp.float32),
        'bt2': 0.1 * jax.random.normal(ks[7], (COUT,), jnp.float32),
        'we': 0.1 * jax.random.normal(ks[8], (COUT, CIN, 1, 1), jnp.float32),
        'be': 0.1 * jax.random.normal(ks[9], (COUT,), jnp.float32),
        'ge': 1.0 + 0.1 * jax.random.normal(ks[10], (COUT,), jnp.float32),
        'bte': 0.1 * jax.random.normal(ks[11], (COUT,), jnp.float32),
    }
    x = jax.random.normal(ks[12], (N, CIN, H, W), jnp.float32)

    ref = jax.block_until_ready(_ref_forward(x, params, STRIDE))

    # f32 compute path: tight numerical check against the pure-JAX reference.
    f32_fwd = jax.jit(lambda xx: restnet_down_block(
        xx, params, STRIDE, compute_dtype=jnp.float32))
    out32 = jax.block_until_ready(f32_fwd(x))
    assert out32.shape == ref.shape == (N, COUT, H // STRIDE[0], W // STRIDE[0])
    assert jnp.allclose(out32, ref, atol=2e-4, rtol=2e-4), (
        float(jnp.max(jnp.abs(out32 - ref))))

    # bf16 matmul path (default for performance): looser, bf16-appropriate check.
    bf16_fwd = jax.jit(lambda xx: restnet_down_block(
        xx, params, STRIDE, compute_dtype=jnp.bfloat16))
    out16 = jax.block_until_ready(bf16_fwd(x))
    assert out16.shape == ref.shape
    assert jnp.allclose(out16, ref, atol=1e-1, rtol=1e-1), (
        float(jnp.max(jnp.abs(out16 - ref))))

    print("KERNEL_OK")
</pallas_src>

<mosaic_0001>
module attributes {stable_mosaic.version = 11 : i64} {
  func.func @_conv_bn_stats_kernel(%arg0: i32, %arg1: memref<128x128xf32, #tpu.memory_space<vmem>>, %arg2: memref<128x128xf32, #tpu.memory_space<vmem>>, %arg3: memref<1x128xf32, #tpu.memory_space<vmem>>, %arg4: memref<1x128xf32, #tpu.memory_space<vmem>>, %arg5: memref<128x128xf32, #tpu.memory_space<vmem>>, %arg6: memref<1x128xf32, #tpu.memory_space<vmem>>, %arg7: memref<1x128xf32, #tpu.memory_space<vmem>>, %arg8: memref<1x128xf32, #tpu.memory_space<vmem>>, %arg9: memref<1x128xf32, #tpu.memory_space<vmem>>) attributes {dimension_semantics = [#tpu.dimension_semantics<arbitrary>], iteration_bounds = array<i64: 1>, scalar_prefetch = 0 : i64, scratch_operands = 2 : i64, tpu.core_type = #tpu.core_type<tc>, window_params = [{transform_indices = @transform_0, window_bounds = array<i64: 128, 128>}, {pipeline_mode = #tpu.pipeline_mode<synchronous>, transform_indices = @transform_1, window_bounds = array<i64: 128, 128>}, {pipeline_mode = #tpu.pipeline_mode<synchronous>, transform_indices = @transform_2, window_bounds = array<i64: 1, 128>}, {pipeline_mode = #tpu.pipeline_mode<synchronous>, transform_indices = @transform_3, window_bounds = array<i64: 1, 128>}, {transform_indices = @transform_4, window_bounds = array<i64: 128, 128>}, {pipeline_mode = #tpu.pipeline_mode<synchronous>, transform_indices = @transform_5, window_bounds = array<i64: 1, 128>}, {pipeline_mode = #tpu.pipeline_mode<synchronous>, transform_indices = @transform_6, window_bounds = array<i64: 1, 128>}]} {
    %c0_i32 = arith.constant 0 : i32
    %0 = arith.cmpi eq, %arg0, %c0_i32 : i32
    %1 = arith.extui %0 : i1 to i32
    %c0_i32_0 = arith.constant 0 : i32
    %2 = arith.cmpi ne, %1, %c0_i32_0 : i32
    scf.if %2 {
      %cst_18 = arith.constant 0.000000e+00 : f32
      %21 = vector.broadcast %cst_18 : f32 to vector<1x128xf32>
      %c0_19 = arith.constant 0 : index
      %c0_20 = arith.constant 0 : index
      %22 = vector.load %arg8[%c0_19, %c0_20] : memref<1x128xf32, #tpu.memory_space<vmem>>, vector<1x128xf32>
      tpu.vector_store %arg8[%c0_19, %c0_20], %21 {strides = array<i32>} : memref<1x128xf32, #tpu.memory_space<vmem>>, vector<1x128xf32>,
      %cst_21 = arith.constant 0.000000e+00 : f32
      %23 = vector.broadcast %cst_21 : f32 to vector<1x128xf32>
      %c0_22 = arith.constant 0 : index
      %c0_23 = arith.constant 0 : index
      %24 = vector.load %arg9[%c0_22, %c0_23] : memref<1x128xf32, #tpu.memory_space<vmem>>, vector<1x128xf32>
      tpu.vector_store %arg9[%c0_22, %c0_23], %23 {strides = array<i32>} : memref<1x128xf32, #tpu.memory_space<vmem>>, vector<1x128xf32>,
    } else {
    }
    %c0 = arith.constant 0 : index
    %c0_1 = arith.constant 0 : index
    %3 = vector.load %arg1[%c0, %c0_1] : memref<128x128xf32, #tpu.memory_space<vmem>>, vector<128x128xf32>
    %c0_2 = arith.constant 0 : index
    %c0_3 = arith.constant 0 : index
    %4 = vector.load %arg2[%c0_2, %c0_3] : memref<128x128xf32, #tpu.memory_space<vmem>>, vector<128x128xf32>
    %cst = arith.constant dense<0.000000e+00> : vector<128x128xf32>
    %5 = tpu.matmul %3, %4, %cst {dimension_numbers = #tpu.dot_dimension_numbers<[1], [0], [0], [1], [0, 0, 1, 1], [], []>} : vector<128x128xf32>, vector<128x128xf32>, vector<128x128xf32> -> vector<128x128xf32>
    %c0_4 = arith.constant 0 : index
    %c0_5 = arith.constant 0 : index
    %6 = vector.load %arg5[%c0_4, %c0_5] : memref<128x128xf32, #tpu.memory_space<vmem>>, vector<128x128xf32>
    tpu.vector_store %arg5[%c0_4, %c0_5], %5 {strides = array<i32>} : memref<128x128xf32, #tpu.memory_space<vmem>>, vector<128x128xf32>,
    %c0_6 = arith.constant 0 : index
    %c0_7 = arith.constant 0 : index
    %7 = vector.load %arg8[%c0_6, %c0_7] : memref<1x128xf32, #tpu.memory_space<vmem>>, vector<1x128xf32>
    %cst_8 = arith.constant dense<0.000000e+00> : vector<128xf32>
    %8 = vector.multi_reduction <add>, %5, %cst_8 [0] : vector<128x128xf32> to vector<128xf32>
    %9 = vector.shape_cast %8 : vector<128xf32> to vector<1x128xf32>
    %10 = arith.addf %7, %9 : vector<1x128xf32>
    %c0_9 = arith.constant 0 : index
    %c0_10 = arith.constant 0 : index
    %11 = vector.load %arg8[%c0_9, %c0_10] : memref<1x128xf32, #tpu.memory_space<vmem>>, vector<1x128xf32>
    tpu.vector_store %arg8[%c0_9, %c0_10], %10 {strides = array<i32>} : memref<1x128xf32, #tpu.memory_space<vmem>>, vector<1x128xf32>,
    %c0_11 = arith.constant 0 : index
    %c0_12 = arith.constant 0 : index
    %12 = vector.load %arg9[%c0_11, %c0_12] : memref<1x128xf32, #tpu.memory_space<vmem>>, vector<1x128xf32>
    %13 = arith.mulf %5, %5 : vector<128x128xf32>
    %cst_13 = arith.constant dense<0.000000e+00> : vector<128xf32>
    %14 = vector.multi_reduction <add>, %13, %cst_13 [0] : vector<128x128xf32> to vector<128xf32>
    %15 = vector.shape_cast %14 : vector<128xf32> to vector<1x128xf32>
    %16 = arith.addf %12, %15 : vector<1x128xf32>
    %c0_14 = arith.constant 0 : index
    %c0_15 = arith.constant 0 : index
    %17 = vector.load %arg9[%c0_14, %c0_15] : memref<1x128xf32, #tpu.memory_space<vmem>>, vector<1x128xf32>
    tpu.vector_store %arg9[%c0_14, %c0_15], %16 {strides = array<i32>} : memref<1x128xf32, #tpu.memory_space<vmem>>, vector<1x128xf32>,
    %c0_i32_16 = arith.constant 0 : i32
    %18 = arith.cmpi eq, %arg0, %c0_i32_16 : i32
    %19 = arith.extui %18 : i1 to i32
    %c0_i32_17 = arith.constant 0 : i32
    %20 = arith.cmpi ne, %19, %c0_i32_17 : i32
    scf.if %20 {
      %c0_18 = arith.constant 0 : index
      %c0_19 = arith.constant 0 : index
      %21 = vector.load %arg8[%c0_18, %c0_19] : memref<1x128xf32, #tpu.memory_space<vmem>>, vector<1x128xf32>
      %cst_20 = arith.constant 7.812500e-03 : f32
      %22 = vector.broadcast %cst_20 : f32 to vector<1x128xf32>
      %23 = arith.mulf %21, %22 : vector<1x128xf32>
      %c0_21 = arith.constant 0 : index
      %c0_22 = arith.constant 0 : index
      %24 = vector.load %arg9[%c0_21, %c0_22] : memref<1x128xf32, #tpu.memory_space<vmem>>, vector<1x128xf32>
      %cst_23 = arith.constant 7.812500e-03 : f32
      %25 = vector.broadcast %cst_23 : f32 to vector<1x128xf32>
      %26 = arith.mulf %24, %25 : vector<1x128xf32>
      %27 = arith.mulf %23, %23 : vector<1x128xf32>
      %28 = arith.subf %26, %27 : vector<1x128xf32>
      %cst_24 = arith.constant 0.000000e+00 : f32
      %29 = vector.broadcast %cst_24 : f32 to vector<1x128xf32>
      %30 = arith.maximumf %28, %29 : vector<1x128xf32>
      %c0_25 = arith.constant 0 : index
      %c0_26 = arith.constant 0 : index
      %31 = vector.load %arg3[%c0_25, %c0_26] : memref<1x128xf32, #tpu.memory_space<vmem>>, vector<1x128xf32>
      %cst_27 = arith.constant 9.99999974E-6 : f32
      %32 = vector.broadcast %cst_27 : f32 to vector<1x128xf32>
      %33 = arith.addf %30, %32 : vector<1x128xf32>
      %34 = math.rsqrt %33 : vector<1x128xf32>
      %35 = arith.mulf %31, %34 : vector<1x128xf32>
      %c0_28 = arith.constant 0 : index
      %c0_29 = arith.constant 0 : index
      %36 = vector.load %arg6[%c0_28, %c0_29] : memref<1x128xf32, #tpu.memory_space<vmem>>, vector<1x128xf32>
      tpu.vector_store %arg6[%c0_28, %c0_29], %35 {strides = array<i32>} : memref<1x128xf32, #tpu.memory_space<vmem>>, vector<1x128xf32>,
      %c0_30 = arith.constant 0 : index
      %c0_31 = arith.constant 0 : index
      %37 = vector.load %arg4[%c0_30, %c0_31] : memref<1x128xf32, #tpu.memory_space<vmem>>, vector<1x128xf32>
      %38 = arith.mulf %23, %35 : vector<1x128xf32>
      %39 = arith.subf %37, %38 : vector<1x128xf32>
      %c0_32 = arith.constant 0 : index
      %c0_33 = arith.constant 0 : index
      %40 = vector.load %arg7[%c0_32, %c0_33] : memref<1x128xf32, #tpu.memory_space<vmem>>, vector<1x128xf32>
      tpu.vector_store %arg7[%c0_32, %c0_33], %39 {strides = array<i32>} : memref<1x128xf32, #tpu.memory_space<vmem>>, vector<1x128xf32>,
    } else {
    }
    return
  }
  func.func @transform_0(%arg0: i32) -> (i32, i32) {
    %c0_i32 = arith.constant 0 : i32
    %c0_i32_0 = arith.constant 0 : i32
    return %arg0, %c0_i32 : i32, i32
  }
  func.func @transform_1(%arg0: i32) -> (i32, i32) {
    %c0_i32 = arith.constant 0 : i32
    %c0_i32_0 = arith.constant 0 : i32
    %c0_i32_1 = arith.constant 0 : i32
    return %c0_i32, %c0_i32_0 : i32, i32
  }
  func.func @transform_2(%arg0: i32) -> (i32, i32) {
    %c0_i32 = arith.constant 0 : i32
    %c0_i32_0 = arith.constant 0 : i32
    %c0_i32_1 = arith.constant 0 : i32
    return %c0_i32, %c0_i32_0 : i32, i32
  }
  func.func @transform_3(%arg0: i32) -> (i32, i32) {
    %c0_i32 = arith.constant 0 : i32
    %c0_i32_0 = arith.constant 0 : i32
    %c0_i32_1 = arith.constant 0 : i32
    return %c0_i32, %c0_i32_0 : i32, i32
  }
  func.func @transform_4(%arg0: i32) -> (i32, i32) {
    %c0_i32 = arith.constant 0 : i32
    %c0_i32_0 = arith.constant 0 : i32
    return %arg0, %c0_i32 : i32, i32
  }
  func.func @transform_5(%arg0: i32) -> (i32, i32) {
    %c0_i32 = arith.constant 0 : i32
    %c0_i32_0 = arith.constant 0 : i32
    %c0_i32_1 = arith.constant 0 : i32
    return %c0_i32, %c0_i32_0 : i32, i32
  }
  func.func @transform_6(%arg0: i32) -> (i32, i32) {
    %c0_i32 = arith.constant 0 : i32
    %c0_i32_0 = arith.constant 0 : i32
    %c0_i32_1 = arith.constant 0 : i32
    return %c0_i32, %c0_i32_0 : i32, i32
  }
}

module attributes {stable_mosaic.version = 11 : i64} {
  func.func @_bn_apply_kernel(%arg0: i32, %arg1: memref<128x128xf32, #tpu.memory_space<vmem>>, %arg2: memref<1x128xf32, #tpu.memory_space<vmem>>, %arg3: memref<1x128xf32, #tpu.memory_space<vmem>>, %arg4: memref<1x128xf32, #tpu.memory_space<vmem>>, %arg5: memref<128x128xf32, #tpu.memory_space<vmem>>) attributes {dimension_semantics = [#tpu.dimension_semantics<parallel>], iteration_bounds = array<i64: 1>, scalar_prefetch = 0 : i64, scratch_operands = 0 : i64, tpu.core_type = #tpu.core_type<tc>, window_params = [{transform_indices = @transform_0, window_bounds = array<i64: 128, 128>}, {pipeline_mode = #tpu.pipeline_mode<synchronous>, transform_indices = @transform_1, window_bounds = array<i64: 1, 128>}, {pipeline_mode = #tpu.pipeline_mode<synchronous>, transform_indices = @transform_2, window_bounds = array<i64: 1, 128>}, {pipeline_mode = #tpu.pipeline_mode<synchronous>, transform_indices = @transform_3, window_bounds = array<i64: 1, 128>}, {transform_indices = @transform_4, window_bounds = array<i64: 128, 128>}]} {
    %c0 = arith.constant 0 : index
    %c0_0 = arith.constant 0 : index
    %0 = vector.load %arg1[%c0, %c0_0] : memref<128x128xf32, #tpu.memory_space<vmem>>, vector<128x128xf32>
    %c0_1 = arith.constant 0 : index
    %c0_2 = arith.constant 0 : index
    %1 = vector.load %arg2[%c0_1, %c0_2] : memref<1x128xf32, #tpu.memory_space<vmem>>, vector<1x128xf32>
    %2 = vector.broadcast %1 : vector<1x128xf32> to vector<128x128xf32>
    %3 = arith.mulf %0, %2 : vector<128x128xf32>
    %c0_3 = arith.constant 0 : index
    %c0_4 = arith.constant 0 : index
    %4 = vector.load %arg3[%c0_3, %c0_4] : memref<1x128xf32, #tpu.memory_space<vmem>>, vector<1x128xf32>
    %5 = vector.broadcast %4 : vector<1x128xf32> to vector<128x128xf32>
    %6 = arith.addf %3, %5 : vector<128x128xf32>
    %c0_5 = arith.constant 0 : index
    %c0_6 = arith.constant 0 : index
    %7 = vector.load %arg4[%c0_5, %c0_6] : memref<1x128xf32, #tpu.memory_space<vmem>>, vector<1x128xf32>
    %cst = arith.constant 1.000000e+00 : f32
    %8 = vector.broadcast %cst : f32 to vector<1x128xf32>
    %9 = arith.subf %8, %7 : vector<1x128xf32>
    %10 = vector.broadcast %9 : vector<1x128xf32> to vector<128x128xf32>
    %11 = arith.mulf %6, %10 : vector<128x128xf32>
    %12 = arith.maximumf %6, %11 : vector<128x128xf32>
    %c0_7 = arith.constant 0 : index
    %c0_8 = arith.constant 0 : index
    %13 = vector.load %arg5[%c0_7, %c0_8] : memref<128x128xf32, #tpu.memory_space<vmem>>, vector<128x128xf32>
    tpu.vector_store %arg5[%c0_7, %c0_8], %12 {strides = array<i32>} : memref<128x128xf32, #tpu.memory_space<vmem>>, vector<128x128xf32>,
    return
  }
  func.func @transform_0(%arg0: i32) -> (i32, i32) {
    %c0_i32 = arith.constant 0 : i32
    %c0_i32_0 = arith.constant 0 : i32
    return %arg0, %c0_i32 : i32, i32
  }
  func.func @transform_1(%arg0: i32) -> (i32, i32) {
    %c0_i32 = arith.constant 0 : i32
    %c0_i32_0 = arith.constant 0 : i32
    %c0_i32_1 = arith.constant 0 : i32
    return %c0_i32, %c0_i32_0 : i32, i32
  }
  func.func @transform_2(%arg0: i32) -> (i32, i32) {
    %c0_i32 = arith.constant 0 : i32
    %c0_i32_0 = arith.constant 0 : i32
    %c0_i32_1 = arith.constant 0 : i32
    return %c0_i32, %c0_i32_0 : i32, i32
  }
  func.func @transform_3(%arg0: i32) -> (i32, i32) {
    %c0_i32 = arith.constant 0 : i32
    %c0_i32_0 = arith.constant 0 : i32
    %c0_i32_1 = arith.constant 0 : i32
    return %c0_i32, %c0_i32_0 : i32, i32
  }
  func.func @transform_4(%arg0: i32) -> (i32, i32) {
    %c0_i32 = arith.constant 0 : i32
    %c0_i32_0 = arith.constant 0 : i32
    return %arg0, %c0_i32 : i32, i32
  }
}

module attributes {stable_mosaic.version = 11 : i64} {
  func.func @_bn_add_relu_kernel(%arg0: i32, %arg1: memref<128x128xf32, #tpu.memory_space<vmem>>, %arg2: memref<1x128xf32, #tpu.memory_space<vmem>>, %arg3: memref<1x128xf32, #tpu.memory_space<vmem>>, %arg4: memref<128x128xf32, #tpu.memory_space<vmem>>, %arg5: memref<128x128xf32, #tpu.memory_space<vmem>>) attributes {dimension_semantics = [#tpu.dimension_semantics<parallel>], iteration_bounds = array<i64: 1>, scalar_prefetch = 0 : i64, scratch_operands = 0 : i64, tpu.core_type = #tpu.core_type<tc>, window_params = [{transform_indices = @transform_0, window_bounds = array<i64: 128, 128>}, {pipeline_mode = #tpu.pipeline_mode<synchronous>, transform_indices = @transform_1, window_bounds = array<i64: 1, 128>}, {pipeline_mode = #tpu.pipeline_mode<synchronous>, transform_indices = @transform_2, window_bounds = array<i64: 1, 128>}, {transform_indices = @transform_3, window_bounds = array<i64: 128, 128>}, {transform_indices = @transform_4, window_bounds = array<i64: 128, 128>}]} {
    %c0 = arith.constant 0 : index
    %c0_0 = arith.constant 0 : index
    %0 = vector.load %arg1[%c0, %c0_0] : memref<128x128xf32, #tpu.memory_space<vmem>>, vector<128x128xf32>
    %c0_1 = arith.constant 0 : index
    %c0_2 = arith.constant 0 : index
    %1 = vector.load %arg2[%c0_1, %c0_2] : memref<1x128xf32, #tpu.memory_space<vmem>>, vector<1x128xf32>
    %2 = vector.broadcast %1 : vector<1x128xf32> to vector<128x128xf32>
    %3 = arith.mulf %0, %2 : vector<128x128xf32>
    %c0_3 = arith.constant 0 : index
    %c0_4 = arith.constant 0 : index
    %4 = vector.load %arg3[%c0_3, %c0_4] : memref<1x128xf32, #tpu.memory_space<vmem>>, vector<1x128xf32>
    %5 = vector.broadcast %4 : vector<1x128xf32> to vector<128x128xf32>
    %6 = arith.addf %3, %5 : vector<128x128xf32>
    %c0_5 = arith.constant 0 : index
    %c0_6 = arith.constant 0 : index
    %7 = vector.load %arg4[%c0_5, %c0_6] : memref<128x128xf32, #tpu.memory_space<vmem>>, vector<128x128xf32>
    %8 = arith.addf %6, %7 : vector<128x128xf32>
    %cst = arith.constant 0.000000e+00 : f32
    %9 = vector.broadcast %cst : f32 to vector<128x128xf32>
    %10 = arith.maximumf %8, %9 : vector<128x128xf32>
    %c0_7 = arith.constant 0 : index
    %c0_8 = arith.constant 0 : index
    %11 = vector.load %arg5[%c0_7, %c0_8] : memref<128x128xf32, #tpu.memory_space<vmem>>, vector<128x128xf32>
    tpu.vector_store %arg5[%c0_7, %c0_8], %10 {strides = array<i32>} : memref<128x128xf32, #tpu.memory_space<vmem>>, vector<128x128xf32>,
    return
  }
  func.func @transform_0(%arg0: i32) -> (i32, i32) {
    %c0_i32 = arith.constant 0 : i32
    %c0_i32_0 = arith.constant 0 : i32
    return %arg0, %c0_i32 : i32, i32
  }
  func.func @transform_1(%arg0: i32) -> (i32, i32) {
    %c0_i32 = arith.constant 0 : i32
    %c0_i32_0 = arith.constant 0 : i32
    %c0_i32_1 = arith.constant 0 : i32
    return %c0_i32, %c0_i32_0 : i32, i32
  }
  func.func @transform_2(%arg0: i32) -> (i32, i32) {
    %c0_i32 = arith.constant 0 : i32
    %c0_i32_0 = arith.constant 0 : i32
    %c0_i32_1 = arith.constant 0 : i32
    return %c0_i32, %c0_i32_0 : i32, i32
  }
  func.func @transform_3(%arg0: i32) -> (i32, i32) {
    %c0_i32 = arith.constant 0 : i32
    %c0_i32_0 = arith.constant 0 : i32
    return %arg0, %c0_i32 : i32, i32
  }
  func.func @transform_4(%arg0: i32) -> (i32, i32) {
    %c0_i32 = arith.constant 0 : i32
    %c0_i32_0 = arith.constant 0 : i32
    return %arg0, %c0_i32 : i32, i32
  }
}

</mosaic_0001>

<llo_original>
// kernel: _lambda_.5
$region0: #{_lambda_.5}
  #allocation0 [shape = 'u32[]', space=smem, size = 0x4, offset = 0x4, fixed_abs, tag = 'smem constant byte address 0x4 - core index']
  #allocation1 [shape = 'u32[144,128]{1,0:T(1,128)}', space=vmem, size = 0x12000, scoped, tag = 'internal scratch']
  %s0 = inlined_call_operand.vmem [shape: f32[128,128], index: 0, kind: input, shape index: {}]
  %s1 = inlined_call_operand.vmem [shape: f32[1,128], index: 1, kind: input, shape index: {}]
  %s2 = inlined_call_operand.vmem [shape: f32[1,128], index: 2, kind: input, shape index: {}]
  %s3 = inlined_call_operand.vmem [shape: f32[1,128], index: 3, kind: input, shape index: {}]
  %s4 = inlined_call_operand.vmem [shape: f32[128,128], index: 4, kind: output, shape index: {}]
  %s5 = sld [smem:[#allocation0]]
  $region26: #{_lambda_.5} parent=0
    _
  %s7 = ssub.s32 1, %s5
  %s8 = scalar_select 0, %s7, %s5
  // Predicated region
  $region2: #{_lambda_.5} parent=0 // pred_check
    _
  $region3: #{_lambda_.5} parent=0 // pred_check_branch
    %10 = sbr.rel (0) target = $region5
  $region4: #{_lambda_.5} parent=0 // pred_region
    _
  $region5: #{_lambda_.5} parent=0 // pred_fallthru
    _
  // Predicated region
  $region6: #{_lambda_.5} parent=0 // pred_check
    _
  $region7: #{_lambda_.5} parent=0 // pred_check_branch
    %12 = sbr.rel (0) target = $region9
  $region8: #{_lambda_.5} parent=0 // pred_region
    _
  $region9: #{_lambda_.5} parent=0 // pred_fallthru
    _
  // Predicated region
  $region10: #{_lambda_.5} parent=0 // pred_check
    _
  $region11: #{_lambda_.5} parent=0 // pred_check_branch
    %14 = sbr.rel (0) target = $region13
  $region12: #{_lambda_.5} parent=0 // pred_region
    _
  $region13: #{_lambda_.5} parent=0 // pred_fallthru
    _
  // Predicated region
  $region14: #{_lambda_.5} parent=0 // pred_check
    _
  $region15: #{_lambda_.5} parent=0 // pred_check_branch
    %16 = sbr.rel (0) target = $region17
  $region16: #{_lambda_.5} parent=0 // pred_region
    _
  $region17: #{_lambda_.5} parent=0 // pred_fallthru
    _
  %v17 = vld [vmem:[%s0] sm:$0xff]
  %v18 = vld [vmem:[%s0 + $0x8] sm:$0xff]
  %v19 = vld [vmem:[%s0 + $0x10] sm:$0xff]
  %v20 = vld [vmem:[%s0 + $0x18] sm:$0xff]
  %v21 = vld [vmem:[%s0 + $0x20] sm:$0xff]
  %v22 = vld [vmem:[%s0 + $0x28] sm:$0xff]
  %v23 = vld [vmem:[%s0 + $0x30] sm:$0xff]
  %v24 = vld [vmem:[%s0 + $0x38] sm:$0xff]
  %v25 = vld [vmem:[%s0 + $0x40] sm:$0xff]
  %v26 = vld [vmem:[%s0 + $0x48] sm:$0xff]
  %v27 = vld [vmem:[%s0 + $0x50] sm:$0xff]
  %v28 = vld [vmem:[%s0 + $0x58] sm:$0xff]
  %v29 = vld [vmem:[%s0 + $0x60] sm:$0xff]
  %v30 = vld [vmem:[%s0 + $0x68] sm:$0xff]
  %v31 = vld [vmem:[%s0 + $0x70] sm:$0xff]
  %v32 = vld [vmem:[%s0 + $0x78] sm:$0xff]
  %v33 = vld [vmem:[%s1] sm:$0x1]
  %v35 = vlaneseq
  %v36 = vshrl.u32 %v35, 7
  %v37 = vsub.s32 0, %v36
  %v38 = vrot.slane %v33, %v37
  %v40 = vmul.f32 %v17, %v38
  %v41 = vmul.f32 %v18, %v38
  %v42 = vmul.f32 %v19, %v38
  %v43 = vmul.f32 %v20, %v38
  %v44 = vmul.f32 %v21, %v38
  %v45 = vmul.f32 %v22, %v38
  %v46 = vmul.f32 %v23, %v38
  %v47 = vmul.f32 %v24, %v38
  %v48 = vmul.f32 %v25, %v38
  %v49 = vmul.f32 %v26, %v38
  %v50 = vmul.f32 %v27, %v38
  %v51 = vmul.f32 %v28, %v38
  %v52 = vmul.f32 %v29, %v38
  %v53 = vmul.f32 %v30, %v38
  %v54 = vmul.f32 %v31, %v38
  %v55 = vmul.f32 %v32, %v38
  %v56 = vld [vmem:[%s2] sm:$0x1]
  %v58 = vlaneseq
  %v59 = vshrl.u32 %v58, 7
  %v60 = vsub.s32 0, %v59
  %v61 = vrot.slane %v56, %v60
  %v63 = vadd.f32 %v40, %v61
  %v64 = vadd.f32 %v41, %v61
  %v65 = vadd.f32 %v42, %v61
  %v66 = vadd.f32 %v43, %v61
  %v67 = vadd.f32 %v44, %v61
  %v68 = vadd.f32 %v45, %v61
  %v69 = vadd.f32 %v46, %v61
  %v70 = vadd.f32 %v47, %v61
  %v71 = vadd.f32 %v48, %v61
  %v72 = vadd.f32 %v49, %v61
  %v73 = vadd.f32 %v50, %v61
  %v74 = vadd.f32 %v51, %v61
  %v75 = vadd.f32 %v52, %v61
  %v76 = vadd.f32 %v53, %v61
  %v77 = vadd.f32 %v54, %v61
  %v78 = vadd.f32 %v55, %v61
  %v79 = vld [vmem:[%s3] sm:$0x1]
  %v80 = vsub.f32 1.0, %v79
  %v82 = vlaneseq
  %v83 = vshrl.u32 %v82, 7
  %v84 = vsub.s32 0, %v83
  %v85 = vrot.slane %v80, %v84
  %v87 = vmul.f32 %v63, %v85
  %v88 = vmul.f32 %v64, %v85
  %v89 = vmul.f32 %v65, %v85
  %v90 = vmul.f32 %v66, %v85
  %v91 = vmul.f32 %v67, %v85
  %v92 = vmul.f32 %v68, %v85
  %v93 = vmul.f32 %v69, %v85
  %v94 = vmul.f32 %v70, %v85
  %v95 = vmul.f32 %v71, %v85
  %v96 = vmul.f32 %v72, %v85
  %v97 = vmul.f32 %v73, %v85
  %v98 = vmul.f32 %v74, %v85
  %v99 = vmul.f32 %v75, %v85
  %v100 = vmul.f32 %v76, %v85
  %v101 = vmul.f32 %v77, %v85
  %v102 = vmul.f32 %v78, %v85
  %v103 = vmax.f32 %v63, %v87
  %v104 = vmax.f32 %v64, %v88
  %v105 = vmax.f32 %v65, %v89
  %v106 = vmax.f32 %v66, %v90
  %v107 = vmax.f32 %v67, %v91
  %v108 = vmax.f32 %v68, %v92
  %v109 = vmax.f32 %v69, %v93
  %v110 = vmax.f32 %v70, %v94
  %v111 = vmax.f32 %v71, %v95
  %v112 = vmax.f32 %v72, %v96
  %v113 = vmax.f32 %v73, %v97
  %v114 = vmax.f32 %v74, %v98
  %v115 = vmax.f32 %v75, %v99
  %v116 = vmax.f32 %v76, %v100
  %v117 = vmax.f32 %v77, %v101
  %v118 = vmax.f32 %v78, %v102
  %119 = vst [vmem:[%s4] sm:$0xff] %v103
  %120 = vst [vmem:[%s4 + $0x8] sm:$0xff] %v104
  %121 = vst [vmem:[%s4 + $0x10] sm:$0xff] %v105
  %122 = vst [vmem:[%s4 + $0x18] sm:$0xff] %v106
  %123 = vst [vmem:[%s4 + $0x20] sm:$0xff] %v107
  %124 = vst [vmem:[%s4 + $0x28] sm:$0xff] %v108
  %125 = vst [vmem:[%s4 + $0x30] sm:$0xff] %v109
  %126 = vst [vmem:[%s4 + $0x38] sm:$0xff] %v110
  %127 = vst [vmem:[%s4 + $0x40] sm:$0xff] %v111
  %128 = vst [vmem:[%s4 + $0x48] sm:$0xff] %v112
  %129 = vst [vmem:[%s4 + $0x50] sm:$0xff] %v113
  %130 = vst [vmem:[%s4 + $0x58] sm:$0xff] %v114
  %131 = vst [vmem:[%s4 + $0x60] sm:$0xff] %v115
  %132 = vst [vmem:[%s4 + $0x68] sm:$0xff] %v116
  %133 = vst [vmem:[%s4 + $0x70] sm:$0xff] %v117
  %134 = vst [vmem:[%s4 + $0x78] sm:$0xff] %v118
  // Predicated region
  $region18: #{_lambda_.5} parent=0 // pred_check
    _
  $region19: #{_lambda_.5} parent=0 // pred_check_branch
    %136 = sbr.rel (0) target = $region21
  $region20: #{_lambda_.5} parent=0 // pred_region
    _
  $region21: #{_lambda_.5} parent=0 // pred_fallthru
    _
  // Predicated region
  $region22: #{_lambda_.5} parent=0 // pred_check
    _
  $region23: #{_lambda_.5} parent=0 // pred_check_branch
    %138 = sbr.rel (0) target = $region25
  $region24: #{_lambda_.5} parent=0 // pred_region
    _
  $region25: #{_lambda_.5} parent=0 // pred_fallthru
    _

// kernel: _lambda_.4
$region0: #{_lambda_.4}
  #allocation0 [shape = 'u32[]', space=smem, size = 0x4, offset = 0x4, fixed_abs, tag = 'smem constant byte address 0x4 - core index']
  #allocation1 [shape = 'u32[144,128]{1,0:T(1,128)}', space=vmem, size = 0x12000, scoped, tag = 'internal scratch']
  #allocation2 [shape = 'f32[1,128]{1,0:T(1,128)}', space=vmem, size = 0x200, scoped, tag = 'scratch operand']
  #allocation3 [shape = 'f32[1,128]{1,0:T(1,128)}', space=vmem, size = 0x200, scoped, tag = 'scratch operand']
  %s0 = inlined_call_operand.vmem [shape: f32[128,128], index: 0, kind: input, shape index: {}]
  %s1 = inlined_call_operand.vmem [shape: f32[128,128], index: 1, kind: input, shape index: {}]
  %s2 = inlined_call_operand.vmem [shape: f32[1,128], index: 2, kind: input, shape index: {}]
  %s3 = inlined_call_operand.vmem [shape: f32[1,128], index: 3, kind: input, shape index: {}]
  %s4 = inlined_call_operand.vmem [shape: f32[128,128], index: 4, kind: output, shape index: {0}]
  %s5 = inlined_call_operand.vmem [shape: f32[1,128], index: 5, kind: output, shape index: {1}]
  %s6 = inlined_call_operand.vmem [shape: f32[1,128], index: 6, kind: output, shape index: {2}]
  %7 = xla_tuple %s4, %s5, %s6
  %s8 = sld [smem:[#allocation0]]
  $region50: #{_lambda_.4} parent=0
    _
  %s10 = ssub.s32 1, %s8
  %s11 = scalar_select 0, %s10, %s8
  // Predicated region
  $region2: #{_lambda_.4} parent=0 // pred_check
    _
  $region3: #{_lambda_.4} parent=0 // pred_check_branch
    %13 = sbr.rel (0) target = $region5
  $region4: #{_lambda_.4} parent=0 // pred_region
    _
  $region5: #{_lambda_.4} parent=0 // pred_fallthru
    _
  // Predicated region
  $region6: #{_lambda_.4} parent=0 // pred_check
    _
  $region7: #{_lambda_.4} parent=0 // pred_check_branch
    %15 = sbr.rel (0) target = $region9
  $region8: #{_lambda_.4} parent=0 // pred_region
    _
  $region9: #{_lambda_.4} parent=0 // pred_fallthru
    _
  // Predicated region
  $region10: #{_lambda_.4} parent=0 // pred_check
    _
  $region11: #{_lambda_.4} parent=0 // pred_check_branch
    %17 = sbr.rel (0) target = $region13
  $region12: #{_lambda_.4} parent=0 // pred_region
    _
  $region13: #{_lambda_.4} parent=0 // pred_fallthru
    _
  // Predicated region
  $region14: #{_lambda_.4} parent=0 // pred_check
    _
  $region15: #{_lambda_.4} parent=0 // pred_check_branch
    %19 = sbr.rel (0) target = $region17
  $region16: #{_lambda_.4} parent=0 // pred_region
    _
  $region17: #{_lambda_.4} parent=0 // pred_fallthru
    _
  %p20 = scmp.eq.s32.totalorder 0, 0
  // Predicated region
  $region18: #{_lambda_.4} parent=0 // pred_check
    %p21 = pneg %p20
  $region19: #{_lambda_.4} parent=0 // pred_check_branch
    %23 = sbr.rel (%p21) target = $region21
  $region20: #{_lambda_.4} parent=0 // pred_region
    %24 = vst [vmem:[#allocation2] sm:$0x1] 0.0
    %25 = vst [vmem:[#allocation3] sm:$0x1] 0.0
  $region21: #{_lambda_.4} parent=0 // pred_fallthru
    _
  %v26 = vld [vmem:[%s0] sm:$0xff]
  %v27 = vld [vmem:[%s0 + $0x8] sm:$0xff]
  %v28 = vld [vmem:[%s0 + $0x10] sm:$0xff]
  %v29 = vld [vmem:[%s0 + $0x18] sm:$0xff]
  %v30 = vld [vmem:[%s0 + $0x20] sm:$0xff]
  %v31 = vld [vmem:[%s0 + $0x28] sm:$0xff]
  %v32 = vld [vmem:[%s0 + $0x30] sm:$0xff]
  %v33 = vld [vmem:[%s0 + $0x38] sm:$0xff]
  %v34 = vld [vmem:[%s0 + $0x40] sm:$0xff]
  %v35 = vld [vmem:[%s0 + $0x48] sm:$0xff]
  %v36 = vld [vmem:[%s0 + $0x50] sm:$0xff]
  %v37 = vld [vmem:[%s0 + $0x58] sm:$0xff]
  %v38 = vld [vmem:[%s0 + $0x60] sm:$0xff]
  %v39 = vld [vmem:[%s0 + $0x68] sm:$0xff]
  %v40 = vld [vmem:[%s0 + $0x70] sm:$0xff]
  %v41 = vld [vmem:[%s0 + $0x78] sm:$0xff]
  %v42 = vld [vmem:[%s1] sm:$0xff]
  %v43 = vld [vmem:[%s1 + $0x8] sm:$0xff]
  %v44 = vld [vmem:[%s1 + $0x10] sm:$0xff]
  %v45 = vld [vmem:[%s1 + $0x18] sm:$0xff]
  %v46 = vld [vmem:[%s1 + $0x20] sm:$0xff]
  %v47 = vld [vmem:[%s1 + $0x28] sm:$0xff]
  %v48 = vld [vmem:[%s1 + $0x30] sm:$0xff]
  %v49 = vld [vmem:[%s1 + $0x38] sm:$0xff]
  %v50 = vld [vmem:[%s1 + $0x40] sm:$0xff]
  %v51 = vld [vmem:[%s1 + $0x48] sm:$0xff]
  %v52 = vld [vmem:[%s1 + $0x50] sm:$0xff]
  %v53 = vld [vmem:[%s1 + $0x58] sm:$0xff]
  %v54 = vld [vmem:[%s1 + $0x60] sm:$0xff]
  %v55 = vld [vmem:[%s1 + $0x68] sm:$0xff]
  %v56 = vld [vmem:[%s1 + $0x70] sm:$0xff]
  %v57 = vld [vmem:[%s1 + $0x78] sm:$0xff]
  %58 = vmatprep.subr.mxu0 0.0
  %59 = vmatpush1.msra.mxu0 %v57
  %60 = vmatprep.subr.mxu0 0.0
  %61 = vmatpush1.msra.mxu0 %v56
  %62 = vmatprep.subr.mxu0 0.0
  %63 = vmatpush1.msra.mxu0 %v55
  %64 = vmatprep.subr.mxu0 0.0
  %65 = vmatpush1.msra.mxu0 %v54
  %66 = vmatprep.subr.mxu0 0.0
  %67 = vmatpush1.msra.mxu0 %v53
  %68 = vmatprep.subr.mxu0 0.0
  %69 = vmatpush1.msra.mxu0 %v52
  %70 = vmatprep.subr.mxu0 0.0
  %71 = vmatpush1.msra.mxu0 %v51
  %72 = vmatprep.subr.mxu0 0.0
  %73 = vmatpush1.msra.mxu0 %v50
  %74 = vmatprep.subr.mxu0 0.0
  %75 = vmatpush1.msra.mxu0 %v49
  %76 = vmatprep.subr.mxu0 0.0
  %77 = vmatpush1.msra.mxu0 %v48
  %78 = vmatprep.subr.mxu0 0.0
  %79 = vmatpush1.msra.mxu0 %v47
  %80 = vmatprep.subr.mxu0 0.0
  %81 = vmatpush1.msra.mxu0 %v46
  %82 = vmatprep.subr.mxu0 0.0
  %83 = vmatpush1.msra.mxu0 %v45
  %84 = vmatprep.subr.mxu0 0.0
  %85 = vmatpush1.msra.mxu0 %v44
  %86 = vmatprep.subr.mxu0 0.0
  %87 = vmatpush1.msra.mxu0 %v43
  %88 = vmatprep.subr.mxu0 0.0
  %89 = vmatpush1.msra.mxu0 %v42
  %90 = vmatprep.subr.mxu0 0.0
  %91 = vmatpush2.msra.mxu0 0.0
  %92 = vmatprep.subr.mxu0 0.0
  %93 = vmatpush2.msra.mxu0 0.0
  %94 = vmatprep.subr.mxu0 0.0
  %95 = vmatpush2.msra.mxu0 0.0
  %96 = vmatprep.subr.mxu0 0.0
  %97 = vmatpush2.msra.mxu0 0.0
  %98 = vmatprep.subr.mxu0 0.0
  %99 = vmatpush2.msra.mxu0 0.0
  %100 = vmatprep.subr.mxu0 0.0
  %101 = vmatpush2.msra.mxu0 0.0
  %102 = vmatprep.subr.mxu0 0.0
  %103 = vmatpush2.msra.mxu0 0.0
  %104 = vmatprep.subr.mxu0 0.0
  %105 = vmatpush2.msra.mxu0 0.0
  %106 = vmatprep.subr.mxu0 0.0
  %107 = vmatpush2.msra.mxu0 0.0
  %108 = vmatprep.subr.mxu0 0.0
  %109 = vmatpush2.msra.mxu0 0.0
  %110 = vmatprep.subr.mxu0 0.0
  %111 = vmatpush2.msra.mxu0 0.0
  %112 = vmatprep.subr.mxu0 0.0
  %113 = vmatpush2.msra.mxu0 0.0
  %114 = vmatprep.subr.mxu0 0.0
  %115 = vmatpush2.msra.mxu0 0.0
  %116 = vmatprep.subr.mxu0 0.0
  %117 = vmatpush2.msra.mxu0 0.0
  %118 = vmatprep.subr.mxu0 0.0
  %119 = vmatpush2.msra.mxu0 0.0
  %120 = vmatprep.subr.mxu0 0.0
  %121 = vmatpush2.msra.mxu0 0.0
  %122 = vmatprep.mubr.f32.mxu0 0.0
  %123 = vmatmul.mubr.f32.gmra.mxu0 %v26
  %v124 = vpop.f32.mrf.mxu0
  %v125 = vadd.f32 0.0, %v124
  %v126 = vpop.f32.mrf.mxu0
  %127 = vmatprep.mubr.f32.mxu0 0.0
  %128 = vmatmul.mubr.f32.gmra.mxu0 %v27
  %v129 = vpop.f32.mrf.mxu0
  %v130 = vadd.f32 0.0, %v129
  %v131 = vpop.f32.mrf.mxu0
  %132 = vmatprep.mubr.f32.mxu0 0.0
  %133 = vmatmul.mubr.f32.gmra.mxu0 %v28
  %v134 = vpop.f32.mrf.mxu0
  %v135 = vadd.f32 0.0, %v134
  %v136 = vpop.f32.mrf.mxu0
  %137 = vmatprep.mubr.f32.mxu0 0.0
  %138 = vmatmul.mubr.f32.gmra.mxu0 %v29
  %v139 = vpop.f32.mrf.mxu0
  %v140 = vadd.f32 0.0, %v139
  %v141 = vpop.f32.mrf.mxu0
  %142 = vmatprep.mubr.f32.mxu0 0.0
  %143 = vmatmul.mubr.f32.gmra.mxu0 %v30
  %v144 = vpop.f32.mrf.mxu0
  %v145 = vadd.f32 0.0, %v144
  %v146 = vpop.f32.mrf.mxu0
  %147 = vmatprep.mubr.f32.mxu0 0.0
  %148 = vmatmul.mubr.f32.gmra.mxu0 %v31
  %v149 = vpop.f32.mrf.mxu0
  %v150 = vadd.f32 0.0, %v149
  %v151 = vpop.f32.mrf.mxu0
  %152 = vmatprep.mubr.f32.mxu0 0.0
  %153 = vmatmul.mubr.f32.gmra.mxu0 %v32
  %v154 = vpop.f32.mrf.mxu0
  %v155 = vadd.f32 0.0, %v154
  %v156 = vpop.f32.mrf.mxu0
  %157 = vmatprep.mubr.f32.mxu0 0.0
  %158 = vmatmul.mubr.f32.gmra.mxu0 %v33
  %v159 = vpop.f32.mrf.mxu0
  %v160 = vadd.f32 0.0, %v159
  %v161 = vpop.f32.mrf.mxu0
  %162 = vmatprep.mubr.f32.mxu0 0.0
  %163 = vmatmul.mubr.f32.gmra.mxu0 %v34
  %v164 = vpop.f32.mrf.mxu0
  %v165 = vadd.f32 0.0, %v164
  %v166 = vpop.f32.mrf.mxu0
  %167 = vmatprep.mubr.f32.mxu0 0.0
  %168 = vmatmul.mubr.f32.gmra.mxu0 %v35
  %v169 = vpop.f32.mrf.mxu0
  %v170 = vadd.f32 0.0, %v169
  %v171 = vpop.f32.mrf.mxu0
  %172 = vmatprep.mubr.f32.mxu0 0.0
  %173 = vmatmul.mubr.f32.gmra.mxu0 %v36
  %v174 = vpop.f32.mrf.mxu0
  %v175 = vadd.f32 0.0, %v174
  %v176 = vpop.f32.mrf.mxu0
  %177 = vmatprep.mubr.f32.mxu0 0.0
  %178 = vmatmul.mubr.f32.gmra.mxu0 %v37
  %v179 = vpop.f32.mrf.mxu0
  %v180 = vadd.f32 0.0, %v179
  %v181 = vpop.f32.mrf.mxu0
  %182 = vmatprep.mubr.f32.mxu0 0.0
  %183 = vmatmul.mubr.f32.gmra.mxu0 %v38
  %v184 = vpop.f32.mrf.mxu0
  %v185 = vadd.f32 0.0, %v184
  %v186 = vpop.f32.mrf.mxu0
  %187 = vmatprep.mubr.f32.mxu0 0.0
  %188 = vmatmul.mubr.f32.gmra.mxu0 %v39
  %v189 = vpop.f32.mrf.mxu0
  %v190 = vadd.f32 0.0, %v189
  %v191 = vpop.f32.mrf.mxu0
  %192 = vmatprep.mubr.f32.mxu0 0.0
  %193 = vmatmul.mubr.f32.gmra.mxu0 %v40
  %v194 = vpop.f32.mrf.mxu0
  %v195 = vadd.f32 0.0, %v194
  %v196 = vpop.f32.mrf.mxu0
  %197 = vmatprep.mubr.f32.mxu0 0.0
  %198 = vmatmul.mubr.f32.gmra.mxu0 %v41
  %v199 = vpop.f32.mrf.mxu0
  %v200 = vadd.f32 0.0, %v199
  %v201 = vpop.f32.mrf.mxu0
  %202 = vdwg.mxu0
  %203 = vst [vmem:[%s4] sm:$0xff] %v125
  %204 = vst [vmem:[%s4 + $0x8] sm:$0xff] %v130
  %205 = vst [vmem:[%s4 + $0x10] sm:$0xff] %v135
  %206 = vst [vmem:[%s4 + $0x18] sm:$0xff] %v140
  %207 = vst [vmem:[%s4 + $0x20] sm:$0xff] %v145
  %208 = vst [vmem:[%s4 + $0x28] sm:$0xff] %v150
  %209 = vst [vmem:[%s4 + $0x30] sm:$0xff] %v155
  %210 = vst [vmem:[%s4 + $0x38] sm:$0xff] %v160
  %211 = vst [vmem:[%s4 + $0x40] sm:$0xff] %v165
  %212 = vst [vmem:[%s4 + $0x48] sm:$0xff] %v170
  %213 = vst [vmem:[%s4 + $0x50] sm:$0xff] %v175
  %214 = vst [vmem:[%s4 + $0x58] sm:$0xff] %v180
  %215 = vst [vmem:[%s4 + $0x60] sm:$0xff] %v185
  %216 = vst [vmem:[%s4 + $0x68] sm:$0xff] %v190
  %217 = vst [vmem:[%s4 + $0x70] sm:$0xff] %v195
  %218 = vst [vmem:[%s4 + $0x78] sm:$0xff] %v200
  %v219 = vld [vmem:[#allocation2] sm:$0x1]
  %v220 = vadd.f32 %v125, %v130
  %v221 = vadd.f32 %v220, %v135
  %v222 = vadd.f32 %v221, %v140
  %v223 = vadd.f32 %v222, %v145
  %v224 = vadd.f32 %v223, %v150
  %v225 = vadd.f32 %v224, %v155
  %v226 = vadd.f32 %v225, %v160
  %v227 = vadd.f32 %v226, %v165
  %v228 = vadd.f32 %v227, %v170
  %v229 = vadd.f32 %v228, %v175
  %v230 = vadd.f32 %v229, %v180
  %v231 = vadd.f32 %v230, %v185
  %v232 = vadd.f32 %v231, %v190
  %v233 = vadd.f32 %v232, %v195
  %v234 = vadd.f32 %v233, %v200
  %v235 = vrot.slane %v234, 4
  %v236 = vadd.f32 %v234, %v235
  %v237 = vrot.slane %v236, 2
  %v238 = vadd.f32 %v236, %v237
  %v239 = vrot.slane %v238, 1
  %v240 = vadd.f32 %v238, %v239
  %v241 = vadd.f32 %v219, %v240
  %242 = vst [vmem:[#allocation2] sm:$0x1] %v241
  %v243 = vld [vmem:[#allocation3] sm:$0x1]
  %v244 = vmul.f32 %v125, %v125
  %v245 = vmul.f32 %v130, %v130
  %v246 = vmul.f32 %v135, %v135
  %v247 = vmul.f32 %v140, %v140
  %v248 = vmul.f32 %v145, %v145
  %v249 = vmul.f32 %v150, %v150
  %v250 = vmul.f32 %v155, %v155
  %v251 = vmul.f32 %v160, %v160
  %v252 = vmul.f32 %v165, %v165
  %v253 = vmul.f32 %v170, %v170
  %v254 = vmul.f32 %v175, %v175
  %v255 = vmul.f32 %v180, %v180
  %v256 = vmul.f32 %v185, %v185
  %v257 = vmul.f32 %v190, %v190
  %v258 = vmul.f32 %v195, %v195
  %v259 = vmul.f32 %v200, %v200
  %v260 = vadd.f32 %v244, %v245
  %v261 = vadd.f32 %v260, %v246
  %v262 = vadd.f32 %v261, %v247
  %v263 = vadd.f32 %v262, %v248
  %v264 = vadd.f32 %v263, %v249
  %v265 = vadd.f32 %v264, %v250
  %v266 = vadd.f32 %v265, %v251
  %v267 = vadd.f32 %v266, %v252
  %v268 = vadd.f32 %v267, %v253
  %v269 = vadd.f32 %v268, %v254
  %v270 = vadd.f32 %v269, %v255
  %v271 = vadd.f32 %v270, %v256
  %v272 = vadd.f32 %v271, %v257
  %v273 = vadd.f32 %v272, %v258
  %v274 = vadd.f32 %v273, %v259
  %v275 = vrot.slane %v274, 4
  %v276 = vadd.f32 %v274, %v275
  %v277 = vrot.slane %v276, 2
  %v278 = vadd.f32 %v276, %v277
  %v279 = vrot.slane %v278, 1
  %v280 = vadd.f32 %v278, %v279
  %v281 = vadd.f32 %v243, %v280
  %282 = vst [vmem:[#allocation3] sm:$0x1] %v281
  // Predicated region
  $region22: #{_lambda_.4} parent=0 // pred_check
    %p283 = pneg %p20
  $region23: #{_lambda_.4} parent=0 // pred_check_branch
    %285 = sbr.rel (%p283) target = $region25
  $region24: #{_lambda_.4} parent=0 // pred_region
    %v286 = vld [vmem:[#allocation2] sm:$0x1]
    %v287 = vmul.f32 %v286, 0.0078125
    %v288 = vld [vmem:[#allocation3] sm:$0x1]
    %v289 = vmul.f32 %v288, 0.0078125
    %v290 = vmul.f32 %v287, %v287
    %v291 = vsub.f32 %v289, %v290
    %v292 = vmax.f32 %v291, 0.0
    %v293 = vld [vmem:[%s2] sm:$0x1]
    %v294 = vadd.f32 %v292, 1e-05
    %v295 = vrsqrt.pop %v294
    %v296 = vmul.f32 %v293, %v295
    %297 = vst [vmem:[%s5] sm:$0x1] %v296
    %v298 = vld [vmem:[%s3] sm:$0x1]
    %v299 = vmul.f32 %v287, %v296
    %v300 = vsub.f32 %v298, %v299
    %301 = vst [vmem:[%s6] sm:$0x1] %v300
  $region25: #{_lambda_.4} parent=0 // pred_fallthru
    _
  // Predicated region
  $region26: #{_lambda_.4} parent=0 // pred_check
    _
  $region27: #{_lambda_.4} parent=0 // pred_check_branch
    %303 = sbr.rel (0) target = $region29
  $region28: #{_lambda_.4} parent=0 // pred_region
    _
  $region29: #{_lambda_.4} parent=0 // pred_fallthru
    _
  // Predicated region
  $region30: #{_lambda_.4} parent=0 // pred_check
    _
  $region31: #{_lambda_.4} parent=0 // pred_check_branch
    %305 = sbr.rel (0) target = $region33
  $region32: #{_lambda_.4} parent=0 // pred_region
    _
  $region33: #{_lambda_.4} parent=0 // pred_fallthru
    _
  // Predicated region
  $region34: #{_lambda_.4} parent=0 // pred_check
    _
  $region35: #{_lambda_.4} parent=0 // pred_check_branch
    %307 = sbr.rel (0) target = $region37
  $region36: #{_lambda_.4} parent=0 // pred_region
    _
  $region37: #{_lambda_.4} parent=0 // pred_fallthru
    _
  // Predicated region
  $region38: #{_lambda_.4} parent=0 // pred_check
    _
  $region39: #{_lambda_.4} parent=0 // pred_check_branch
    %309 = sbr.rel (0) target = $region41
  $region40: #{_lambda_.4} parent=0 // pred_region
    _
  $region41: #{_lambda_.4} parent=0 // pred_fallthru
    _
  // Predicated region
  $region42: #{_lambda_.4} parent=0 // pred_check
    _
  $region43: #{_lambda_.4} parent=0 // pred_check_branch
    %311 = sbr.rel (0) target = $region45
  $region44: #{_lambda_.4} parent=0 // pred_region
    _
  $region45: #{_lambda_.4} parent=0 // pred_fallthru
    _
  // Predicated region
  $region46: #{_lambda_.4} parent=0 // pred_check
    _
  $region47: #{_lambda_.4} parent=0 // pred_check_branch
    %313 = sbr.rel (0) target = $region49
  $region48: #{_lambda_.4} parent=0 // pred_region
    _
  $region49: #{_lambda_.4} parent=0 // pred_fallthru
    _

// kernel: _lambda_.7
$region0: #{_lambda_.7}
  #allocation0 [shape = 'u32[]', space=smem, size = 0x4, offset = 0x4, fixed_abs, tag = 'smem constant byte address 0x4 - core index']
  #allocation1 [shape = 'u32[144,128]{1,0:T(1,128)}', space=vmem, size = 0x12000, scoped, tag = 'internal scratch']
  %s0 = inlined_call_operand.vmem [shape: f32[128,128], index: 0, kind: input, shape index: {}]
  %s1 = inlined_call_operand.vmem [shape: f32[1,128], index: 1, kind: input, shape index: {}]
  %s2 = inlined_call_operand.vmem [shape: f32[1,128], index: 2, kind: input, shape index: {}]
  %s3 = inlined_call_operand.vmem [shape: f32[128,128], index: 3, kind: input, shape index: {}]
  %s4 = inlined_call_operand.vmem [shape: f32[128,128], index: 4, kind: output, shape index: {}]
  %s5 = sld [smem:[#allocation0]]
  $region26: #{_lambda_.7} parent=0
    _
  %s7 = ssub.s32 1, %s5
  %s8 = scalar_select 0, %s7, %s5
  // Predicated region
  $region2: #{_lambda_.7} parent=0 // pred_check
    _
  $region3: #{_lambda_.7} parent=0 // pred_check_branch
    %10 = sbr.rel (0) target = $region5
  $region4: #{_lambda_.7} parent=0 // pred_region
    _
  $region5: #{_lambda_.7} parent=0 // pred_fallthru
    _
  // Predicated region
  $region6: #{_lambda_.7} parent=0 // pred_check
    _
  $region7: #{_lambda_.7} parent=0 // pred_check_branch
    %12 = sbr.rel (0) target = $region9
  $region8: #{_lambda_.7} parent=0 // pred_region
    _
  $region9: #{_lambda_.7} parent=0 // pred_fallthru
    _
  // Predicated region
  $region10: #{_lambda_.7} parent=0 // pred_check
    _
  $region11: #{_lambda_.7} parent=0 // pred_check_branch
    %14 = sbr.rel (0) target = $region13
  $region12: #{_lambda_.7} parent=0 // pred_region
    _
  $region13: #{_lambda_.7} parent=0 // pred_fallthru
    _
  // Predicated region
  $region14: #{_lambda_.7} parent=0 // pred_check
    _
  $region15: #{_lambda_.7} parent=0 // pred_check_branch
    %16 = sbr.rel (0) target = $region17
  $region16: #{_lambda_.7} parent=0 // pred_region
    _
  $region17: #{_lambda_.7} parent=0 // pred_fallthru
    _
  %v17 = vld [vmem:[%s0] sm:$0xff]
  %v18 = vld [vmem:[%s0 + $0x8] sm:$0xff]
  %v19 = vld [vmem:[%s0 + $0x10] sm:$0xff]
  %v20 = vld [vmem:[%s0 + $0x18] sm:$0xff]
  %v21 = vld [vmem:[%s0 + $0x20] sm:$0xff]
  %v22 = vld [vmem:[%s0 + $0x28] sm:$0xff]
  %v23 = vld [vmem:[%s0 + $0x30] sm:$0xff]
  %v24 = vld [vmem:[%s0 + $0x38] sm:$0xff]
  %v25 = vld [vmem:[%s0 + $0x40] sm:$0xff]
  %v26 = vld [vmem:[%s0 + $0x48] sm:$0xff]
  %v27 = vld [vmem:[%s0 + $0x50] sm:$0xff]
  %v28 = vld [vmem:[%s0 + $0x58] sm:$0xff]
  %v29 = vld [vmem:[%s0 + $0x60] sm:$0xff]
  %v30 = vld [vmem:[%s0 + $0x68] sm:$0xff]
  %v31 = vld [vmem:[%s0 + $0x70] sm:$0xff]
  %v32 = vld [vmem:[%s0 + $0x78] sm:$0xff]
  %v33 = vld [vmem:[%s1] sm:$0x1]
  %v35 = vlaneseq
  %v36 = vshrl.u32 %v35, 7
  %v37 = vsub.s32 0, %v36
  %v38 = vrot.slane %v33, %v37
  %v40 = vmul.f32 %v17, %v38
  %v41 = vmul.f32 %v18, %v38
  %v42 = vmul.f32 %v19, %v38
  %v43 = vmul.f32 %v20, %v38
  %v44 = vmul.f32 %v21, %v38
  %v45 = vmul.f32 %v22, %v38
  %v46 = vmul.f32 %v23, %v38
  %v47 = vmul.f32 %v24, %v38
  %v48 = vmul.f32 %v25, %v38
  %v49 = vmul.f32 %v26, %v38
  %v50 = vmul.f32 %v27, %v38
  %v51 = vmul.f32 %v28, %v38
  %v52 = vmul.f32 %v29, %v38
  %v53 = vmul.f32 %v30, %v38
  %v54 = vmul.f32 %v31, %v38
  %v55 = vmul.f32 %v32, %v38
  %v56 = vld [vmem:[%s2] sm:$0x1]
  %v58 = vlaneseq
  %v59 = vshrl.u32 %v58, 7
  %v60 = vsub.s32 0, %v59
  %v61 = vrot.slane %v56, %v60
  %v63 = vadd.f32 %v40, %v61
  %v64 = vadd.f32 %v41, %v61
  %v65 = vadd.f32 %v42, %v61
  %v66 = vadd.f32 %v43, %v61
  %v67 = vadd.f32 %v44, %v61
  %v68 = vadd.f32 %v45, %v61
  %v69 = vadd.f32 %v46, %v61
  %v70 = vadd.f32 %v47, %v61
  %v71 = vadd.f32 %v48, %v61
  %v72 = vadd.f32 %v49, %v61
  %v73 = vadd.f32 %v50, %v61
  %v74 = vadd.f32 %v51, %v61
  %v75 = vadd.f32 %v52, %v61
  %v76 = vadd.f32 %v53, %v61
  %v77 = vadd.f32 %v54, %v61
  %v78 = vadd.f32 %v55, %v61
  %v79 = vld [vmem:[%s3] sm:$0xff]
  %v80 = vld [vmem:[%s3 + $0x8] sm:$0xff]
  %v81 = vld [vmem:[%s3 + $0x10] sm:$0xff]
  %v82 = vld [vmem:[%s3 + $0x18] sm:$0xff]
  %v83 = vld [vmem:[%s3 + $0x20] sm:$0xff]
  %v84 = vld [vmem:[%s3 + $0x28] sm:$0xff]
  %v85 = vld [vmem:[%s3 + $0x30] sm:$0xff]
  %v86 = vld [vmem:[%s3 + $0x38] sm:$0xff]
  %v87 = vld [vmem:[%s3 + $0x40] sm:$0xff]
  %v88 = vld [vmem:[%s3 + $0x48] sm:$0xff]
  %v89 = vld [vmem:[%s3 + $0x50] sm:$0xff]
  %v90 = vld [vmem:[%s3 + $0x58] sm:$0xff]
  %v91 = vld [vmem:[%s3 + $0x60] sm:$0xff]
  %v92 = vld [vmem:[%s3 + $0x68] sm:$0xff]
  %v93 = vld [vmem:[%s3 + $0x70] sm:$0xff]
  %v94 = vld [vmem:[%s3 + $0x78] sm:$0xff]
  %v95 = vadd.f32 %v63, %v79
  %v96 = vadd.f32 %v64, %v80
  %v97 = vadd.f32 %v65, %v81
  %v98 = vadd.f32 %v66, %v82
  %v99 = vadd.f32 %v67, %v83
  %v100 = vadd.f32 %v68, %v84
  %v101 = vadd.f32 %v69, %v85
  %v102 = vadd.f32 %v70, %v86
  %v103 = vadd.f32 %v71, %v87
  %v104 = vadd.f32 %v72, %v88
  %v105 = vadd.f32 %v73, %v89
  %v106 = vadd.f32 %v74, %v90
  %v107 = vadd.f32 %v75, %v91
  %v108 = vadd.f32 %v76, %v92
  %v109 = vadd.f32 %v77, %v93
  %v110 = vadd.f32 %v78, %v94
  %v111 = vmax.f32 %v95, 0.0
  %v112 = vmax.f32 %v96, 0.0
  %v113 = vmax.f32 %v97, 0.0
  %v114 = vmax.f32 %v98, 0.0
  %v115 = vmax.f32 %v99, 0.0
  %v116 = vmax.f32 %v100, 0.0
  %v117 = vmax.f32 %v101, 0.0
  %v118 = vmax.f32 %v102, 0.0
  %v119 = vmax.f32 %v103, 0.0
  %v120 = vmax.f32 %v104, 0.0
  %v121 = vmax.f32 %v105, 0.0
  %v122 = vmax.f32 %v106, 0.0
  %v123 = vmax.f32 %v107, 0.0
  %v124 = vmax.f32 %v108, 0.0
  %v125 = vmax.f32 %v109, 0.0
  %v126 = vmax.f32 %v110, 0.0
  %127 = vst [vmem:[%s4] sm:$0xff] %v111
  %128 = vst [vmem:[%s4 + $0x8] sm:$0xff] %v112
  %129 = vst [vmem:[%s4 + $0x10] sm:$0xff] %v113
  %130 = vst [vmem:[%s4 + $0x18] sm:$0xff] %v114
  %131 = vst [vmem:[%s4 + $0x20] sm:$0xff] %v115
  %132 = vst [vmem:[%s4 + $0x28] sm:$0xff] %v116
  %133 = vst [vmem:[%s4 + $0x30] sm:$0xff] %v117
  %134 = vst [vmem:[%s4 + $0x38] sm:$0xff] %v118
  %135 = vst [vmem:[%s4 + $0x40] sm:$0xff] %v119
  %136 = vst [vmem:[%s4 + $0x48] sm:$0xff] %v120
  %137 = vst [vmem:[%s4 + $0x50] sm:$0xff] %v121
  %138 = vst [vmem:[%s4 + $0x58] sm:$0xff] %v122
  %139 = vst [vmem:[%s4 + $0x60] sm:$0xff] %v123
  %140 = vst [vmem:[%s4 + $0x68] sm:$0xff] %v124
  %141 = vst [vmem:[%s4 + $0x70] sm:$0xff] %v125
  %142 = vst [vmem:[%s4 + $0x78] sm:$0xff] %v126
  // Predicated region
  $region18: #{_lambda_.7} parent=0 // pred_check
    _
  $region19: #{_lambda_.7} parent=0 // pred_check_branch
    %144 = sbr.rel (0) target = $region21
  $region20: #{_lambda_.7} parent=0 // pred_region
    _
  $region21: #{_lambda_.7} parent=0 // pred_fallthru
    _
  // Predicated region
  $region22: #{_lambda_.7} parent=0 // pred_check
    _
  $region23: #{_lambda_.7} parent=0 // pred_check_branch
    %146 = sbr.rel (0) target = $region25
  $region24: #{_lambda_.7} parent=0 // pred_region
    _
  $region25: #{_lambda_.7} parent=0 // pred_fallthru
    _

</llo_original>
